<compile_context>
chip_gen: v6e
topology: v6e:2x2x1
jax: 0.10.0
libtpu: 0.0.40
codegen_flags: <defaults>
</compile_context>

<pallas_src>
import jax
import jax.numpy as jnp
from jax import lax
from jax.experimental import pallas as pl
from jax.experimental.pallas import tpu as pltpu


def _aggregator_kernel(grid_ref, region_ref,
                       wg_ref, bg_ref,
                       wr_ref, br_ref,
                       centers_ref, rbar_ref,
                       wo_ref, bo_ref,
                       out_ref):
    B, M, Dg = grid_ref.shape
    _, P, Dr = region_ref.shape
    K, H = centers_ref.shape

    wo = wo_ref[...]                     # [H, H] bf16
    bo = bo_ref[...]                     # [1, H] f32
    centers = centers_ref[...]           # [K, H] f32
    rbar = rbar_ref[...]                 # [1, H] f32

    # ---- grid_proj / region_proj: whole batch as one MXU matmul each (bf16 in, f32 acc)
    g2 = grid_ref[...].reshape(B * M, Dg).astype(jnp.bfloat16)
    gp = jnp.dot(g2, wg_ref[...], preferred_element_type=jnp.float32) + bg_ref[...]   # [B*M, H]
    r2 = region_ref[...].reshape(B * P, Dr).astype(jnp.bfloat16)
    rp = jnp.dot(r2, wr_ref[...], preferred_element_type=jnp.float32) + br_ref[...]   # [B*P, H]

    # ---- output_proj of enhanced grid/region rows, written straight to out_ref
    #      (no concatenate; the big gp projection is issued first so its MXU work
    #       overlaps the softmax/aggregation epilogue below).
    out_g = jnp.dot(gp.astype(jnp.bfloat16), wo, preferred_element_type=jnp.float32) + bo
    out_ref[:, 0:M, :] = out_g.reshape(B, M, H)
    out_r = jnp.dot(rp.astype(jnp.bfloat16), wo, preferred_element_type=jnp.float32) + bo
    out_ref[:, M:M + P, :] = out_r.reshape(B, P, H)

    # ---- correlation softmax (eq. 9) + aggregation (eq. 10), per batch element.
    #      B is small and static -> unrolled Python loop.
    gp3 = gp.reshape(B, M, H)
    for b in range(B):
        gp_b = gp3[b]                                                   # [M, H] f32

        # Transposed scores [K, M]: lane-dense over M; softmax across K (sublanes).
        # NOTE: (grid_bias + region_bias) is a scalar added uniformly over the
        # softmax axis, so it cancels exactly after normalization -> omitted.
        sc = lax.dot_general(centers, gp_b, (((1,), (1,)), ((), ())),
                             preferred_element_type=jnp.float32)        # [K, M]
        sc = sc - jnp.max(sc, axis=0, keepdims=True)
        e = jnp.exp(sc)
        w = e * pl.reciprocal(jnp.sum(e, axis=0, keepdims=True), approx=True)  # [K, M]

        # aggregation: sum_j w[i, j] * (gp_j - r_bar), then L2-normalize rows
        gc = gp_b - rbar                                                # [M, H]
        agg = jnp.dot(w, gc, preferred_element_type=jnp.float32)        # [K, H]
        sumsq = jnp.sum(agg * agg, axis=-1, keepdims=True)
        agg = agg * lax.rsqrt(jnp.maximum(sumsq, 1e-24))                # == x / max(||x||, 1e-12)

        # TODO(synk): dynamic graph construction (data-dependent, thresholded top-k
        # edge lists) and the torch_geometric TransformerConv GNN stack with
        # per-layer LayerNorm/Dropout have no clean static-shape Pallas equivalent
        # (the GNN classes are also undefined in the reference source); skipped.

        out_a = jnp.dot(agg.astype(jnp.bfloat16), wo,
                        preferred_element_type=jnp.float32) + bo        # [K, H]
        out_ref[b, M + P:, :] = out_a


def region_grid_aggregate(grid_features, region_features, params):
    """Returns combined features [B, M+P+K, H] (cat of enhanced grid/region/agg nodes)."""
    B, M, Dg = grid_features.shape
    P, Dr = region_features.shape[1], region_features.shape[2]
    K, H = params["centers"].shape
    N = M + P + K

    vmem_specs = [pl.BlockSpec(memory_space=pltpu.MemorySpace.VMEM) for _ in range(10)]
    return pl.pallas_call(
        _aggregator_kernel,
        out_shape=jax.ShapeDtypeStruct((B, N, H), jnp.float32),
        in_specs=vmem_specs,
        out_specs=pl.BlockSpec(memory_space=pltpu.MemorySpace.VMEM),
    )(grid_features, region_features,
      params["wg"], params["bg"], params["wr"], params["br"],
      params["centers"], params["rbar"],
      params["wo"], params["bo"])


def make_params(key, grid_dim, region_dim, hidden, num_clusters):
    """Deterministic parameter init mirroring the module's __init__/_init_parameters.

    Matmul weights are stored bf16 (MXU-native); biases / centers / r_bar stay f32.
    """
    ks = jax.random.split(key, 8)

    def uniform(k, shape, bound):
        return jax.random.uniform(k, shape, jnp.float32, -bound, bound)

    # Linear layers (PyTorch default: U(-1/sqrt(fan_in), 1/sqrt(fan_in))), stored [in, out]
    wg = uniform(ks[0], (grid_dim, hidden), 1.0 / (grid_dim ** 0.5)).astype(jnp.bfloat16)
    bg = uniform(ks[1], (1, hidden), 1.0 / (grid_dim ** 0.5))
    wr = uniform(ks[2], (region_dim, hidden), 1.0 / (region_dim ** 0.5)).astype(jnp.bfloat16)
    br = uniform(ks[3], (1, hidden), 1.0 / (region_dim ** 0.5))
    wo = uniform(ks[4], (hidden, hidden), 1.0 / (hidden ** 0.5)).astype(jnp.bfloat16)
    bo = uniform(ks[5], (1, hidden), 1.0 / (hidden ** 0.5))
    # xavier_uniform for cluster_centers and r_bar
    centers = uniform(ks[6], (num_clusters, hidden), (6.0 / (num_clusters + hidden)) ** 0.5)
    rbar = uniform(ks[7], (1, hidden), (6.0 / (1 + hidden)) ** 0.5)
    # grid_bias / region_bias are zero-initialized and cancel under the softmax -> not stored
    return dict(wg=wg, bg=bg, wr=wr, br=br, centers=centers, rbar=rbar, wo=wo, bo=bo)


def reference_forward(grid_features, region_features, p):
    """Pure-JAX f32 reference of the implemented (non-GNN) math, for a sanity check."""
    gp = grid_features @ p["wg"].astype(jnp.float32) + p["bg"]
    rp = region_features @ p["wr"].astype(jnp.float32) + p["br"]
    scores = jnp.einsum("bmh,kh->bmk", gp, p["centers"])
    w = jax.nn.softmax(scores, axis=-1)
    gc = gp - p["rbar"]
    agg = jnp.einsum("bmk,bmh->bkh", w, gc)
    agg = agg / jnp.maximum(jnp.linalg.norm(agg, axis=-1, keepdims=True), 1e-12)
    nodes = jnp.concatenate([gp, rp, agg], axis=1)
    return nodes @ p["wo"].astype(jnp.float32) + p["bo"]


if __name__ == "__main__":
    # Small shapes consistent with the module's forward (M = grid tokens, P = regions,
    # K = cluster centers, hidden feature dim). M, P, K are multiples of 8 and the
    # feature dims multiples of 128 so all tiles stay (8,128)-aligned; the production
    # P=50 / K=10 would need row padding.
    B = 2
    GRID_DIM = 128      # grid_feature_dim (hardcoded 128 in the module)
    REGION_DIM = 256    # region_feature_dim (512 in module; reduced for a small test)
    HIDDEN = 128        # hidden_dim
    M = 64              # (224/4)^2 = 3136 in module; 8x8 grid here
    P = 16              # num_regions
    K = 8               # num_cluster_centers

    key = jax.random.PRNGKey(0)
    k_img, k_grid, k_region, k_params = jax.random.split(key, 4)

    # The torch forward ignores `images` and draws random grid/region features;
    # here we draw them deterministically from the PRNG instead of torch.randn.
    images = jax.random.normal(k_img, (B, 3, 16, 16), jnp.float32)   # unused, kept for fidelity
    grid_features = jax.random.normal(k_grid, (B, M, GRID_DIM), jnp.float32)
    region_features = jax.random.normal(k_region, (B, P, REGION_DIM), jnp.float32)

    params = make_params(k_params, GRID_DIM, REGION_DIM, HIDDEN, K)

    out = region_grid_aggregate(grid_features, region_features, params)
    out = jax.block_until_ready(out)

    ref = reference_forward(grid_features, region_features, params)
    assert out.shape == (B, M + P + K, HIDDEN)
    assert jnp.allclose(out, ref, rtol=3e-2, atol=3e-2), "mismatch vs pure-JAX reference"

    print("KERNEL_OK")
</pallas_src>

<mosaic_0001>
module attributes {stable_mosaic.version = 11 : i64} {
  func.func @_aggregator_kernel(%arg0: memref<2x64x128xf32, #tpu.memory_space<vmem>>, %arg1: memref<2x16x256xf32, #tpu.memory_space<vmem>>, %arg2: memref<128x128xbf16, #tpu.memory_space<vmem>>, %arg3: memref<1x128xf32, #tpu.memory_space<vmem>>, %arg4: memref<256x128xbf16, #tpu.memory_space<vmem>>, %arg5: memref<1x128xf32, #tpu.memory_space<vmem>>, %arg6: memref<8x128xf32, #tpu.memory_space<vmem>>, %arg7: memref<1x128xf32, #tpu.memory_space<vmem>>, %arg8: memref<128x128xbf16, #tpu.memory_space<vmem>>, %arg9: memref<1x128xf32, #tpu.memory_space<vmem>>, %arg10: memref<2x88x128xf32, #tpu.memory_space<vmem>>) attributes {dimension_semantics = [], scalar_prefetch = 0 : i64, scratch_operands = 0 : i64, tpu.core_type = #tpu.core_type<tc>} {
    %c0 = arith.constant 0 : index
    %c0_0 = arith.constant 0 : index
    %0 = vector.load %arg8[%c0, %c0_0] : memref<128x128xbf16, #tpu.memory_space<vmem>>, vector<128x128xbf16>
    %c0_1 = arith.constant 0 : index
    %c0_2 = arith.constant 0 : index
    %1 = vector.load %arg9[%c0_1, %c0_2] : memref<1x128xf32, #tpu.memory_space<vmem>>, vector<1x128xf32>
    %c0_3 = arith.constant 0 : index
    %c0_4 = arith.constant 0 : index
    %2 = vector.load %arg6[%c0_3, %c0_4] : memref<8x128xf32, #tpu.memory_space<vmem>>, vector<8x128xf32>
    %c0_5 = arith.constant 0 : index
    %c0_6 = arith.constant 0 : index
    %3 = vector.load %arg7[%c0_5, %c0_6] : memref<1x128xf32, #tpu.memory_space<vmem>>, vector<1x128xf32>
    %c0_7 = arith.constant 0 : index
    %c0_8 = arith.constant 0 : index
    %c0_9 = arith.constant 0 : index
    %4 = vector.load %arg0[%c0_7, %c0_8, %c0_9] : memref<2x64x128xf32, #tpu.memory_space<vmem>>, vector<2x64x128xf32>
    %5 = vector.shape_cast %4 : vector<2x64x128xf32> to vector<128x128xf32>
    %6 = arith.truncf %5 : vector<128x128xf32> to vector<128x128xbf16>
    %c0_10 = arith.constant 0 : index
    %c0_11 = arith.constant 0 : index
    %7 = vector.load %arg2[%c0_10, %c0_11] : memref<128x128xbf16, #tpu.memory_space<vmem>>, vector<128x128xbf16>
    %cst = arith.constant dense<0.000000e+00> : vector<128x128xf32>
    %8 = tpu.matmul %6, %7, %cst {dimension_numbers = #tpu.dot_dimension_numbers<[1], [0], [0], [1], [0, 0, 1, 1], [], []>} : vector<128x128xbf16>, vector<128x128xbf16>, vector<128x128xf32> -> vector<128x128xf32>
    %c0_12 = arith.constant 0 : index
    %c0_13 = arith.constant 0 : index
    %9 = vector.load %arg3[%c0_12, %c0_13] : memref<1x128xf32, #tpu.memory_space<vmem>>, vector<1x128xf32>
    %10 = vector.broadcast %9 : vector<1x128xf32> to vector<128x128xf32>
    %11 = arith.addf %8, %10 : vector<128x128xf32>
    %c0_14 = arith.constant 0 : index
    %c0_15 = arith.constant 0 : index
    %c0_16 = arith.constant 0 : index
    %12 = vector.load %arg1[%c0_14, %c0_15, %c0_16] : memref<2x16x256xf32, #tpu.memory_space<vmem>>, vector<2x16x256xf32>
    %13 = vector.shape_cast %12 : vector<2x16x256xf32> to vector<32x256xf32>
    %14 = arith.truncf %13 : vector<32x256xf32> to vector<32x256xbf16>
    %c0_17 = arith.constant 0 : index
    %c0_18 = arith.constant 0 : index
    %15 = vector.load %arg4[%c0_17, %c0_18] : memref<256x128xbf16, #tpu.memory_space<vmem>>, vector<256x128xbf16>
    %cst_19 = arith.constant dense<0.000000e+00> : vector<32x128xf32>
    %16 = tpu.matmul %14, %15, %cst_19 {dimension_numbers = #tpu.dot_dimension_numbers<[1], [0], [0], [1], [0, 0, 1, 1], [], []>} : vector<32x256xbf16>, vector<256x128xbf16>, vector<32x128xf32> -> vector<32x128xf32>
    %c0_20 = arith.constant 0 : index
    %c0_21 = arith.constant 0 : index
    %17 = vector.load %arg5[%c0_20, %c0_21] : memref<1x128xf32, #tpu.memory_space<vmem>>, vector<1x128xf32>
    %18 = vector.broadcast %17 : vector<1x128xf32> to vector<32x128xf32>
    %19 = arith.addf %16, %18 : vector<32x128xf32>
    %20 = arith.truncf %11 : vector<128x128xf32> to vector<128x128xbf16>
    %cst_22 = arith.constant dense<0.000000e+00> : vector<128x128xf32>
    %21 = tpu.matmul %20, %0, %cst_22 {dimension_numbers = #tpu.dot_dimension_numbers<[1], [0], [0], [1], [0, 0, 1, 1], [], []>} : vector<128x128xbf16>, vector<128x128xbf16>, vector<128x128xf32> -> vector<128x128xf32>
    %22 = vector.broadcast %1 : vector<1x128xf32> to vector<128x128xf32>
    %23 = arith.addf %21, %22 : vector<128x128xf32>
    %24 = vector.shape_cast %23 : vector<128x128xf32> to vector<2x64x128xf32>
    %c0_23 = arith.constant 0 : index
    %c0_24 = arith.constant 0 : index
    %c0_25 = arith.constant 0 : index
    %25 = vector.load %arg10[%c0_23, %c0_24, %c0_25] : memref<2x88x128xf32, #tpu.memory_space<vmem>>, vector<2x64x128xf32>
    tpu.vector_store %arg10[%c0_23, %c0_24, %c0_25], %24 {strides = array<i32>} : memref<2x88x128xf32, #tpu.memory_space<vmem>>, vector<2x64x128xf32>,
    %26 = arith.truncf %19 : vector<32x128xf32> to vector<32x128xbf16>
    %cst_26 = arith.constant dense<0.000000e+00> : vector<32x128xf32>
    %27 = tpu.matmul %26, %0, %cst_26 {dimension_numbers = #tpu.dot_dimension_numbers<[1], [0], [0], [1], [0, 0, 1, 1], [], []>} : vector<32x128xbf16>, vector<128x128xbf16>, vector<32x128xf32> -> vector<32x128xf32>
    %28 = vector.broadcast %1 : vector<1x128xf32> to vector<32x128xf32>
    %29 = arith.addf %27, %28 : vector<32x128xf32>
    %30 = vector.shape_cast %29 : vector<32x128xf32> to vector<2x16x128xf32>
    %c0_27 = arith.constant 0 : index
    %c64 = arith.constant 64 : index
    %c0_28 = arith.constant 0 : index
    %31 = vector.load %arg10[%c0_27, %c64, %c0_28] : memref<2x88x128xf32, #tpu.memory_space<vmem>>, vector<2x16x128xf32>
    tpu.vector_store %arg10[%c0_27, %c64, %c0_28], %30 {strides = array<i32>} : memref<2x88x128xf32, #tpu.memory_space<vmem>>, vector<2x16x128xf32>,
    %32 = vector.shape_cast %11 : vector<128x128xf32> to vector<2x64x128xf32>
    %33 = vector.extract_strided_slice %32 {offsets = [0, 0, 0], sizes = [1, 64, 128], strides = [1, 1, 1]} : vector<2x64x128xf32> to vector<1x64x128xf32>
    %34 = vector.shape_cast %33 : vector<1x64x128xf32> to vector<64x128xf32>
    %cst_29 = arith.constant dense<0.000000e+00> : vector<8x64xf32>
    %35 = tpu.matmul %2, %34, %cst_29 {dimension_numbers = #tpu.dot_dimension_numbers<[1], [1], [0], [0], [0, 0, 1, 0], [], []>} : vector<8x128xf32>, vector<64x128xf32>, vector<8x64xf32> -> vector<8x64xf32>
    %cst_30 = arith.constant dense<0xFF800000> : vector<64xf32>
    %36 = vector.multi_reduction <maximumf>, %35, %cst_30 [0] : vector<8x64xf32> to vector<64xf32>
    %37 = vector.shape_cast %36 : vector<64xf32> to vector<1x64xf32>
    %38 = vector.broadcast %37 : vector<1x64xf32> to vector<8x64xf32>
    %39 = arith.subf %35, %38 : vector<8x64xf32>
    %40 = math.exp %39 : vector<8x64xf32>
    %cst_31 = arith.constant dense<0.000000e+00> : vector<64xf32>
    %41 = vector.multi_reduction <add>, %40, %cst_31 [0] : vector<8x64xf32> to vector<64xf32>
    %42 = vector.shape_cast %41 : vector<64xf32> to vector<1x64xf32>
    %43 = tpu.reciprocal %42 {approx = true} : vector<1x64xf32> -> vector<1x64xf32>
    %44 = vector.broadcast %43 : vector<1x64xf32> to vector<8x64xf32>
    %45 = arith.mulf %40, %44 : vector<8x64xf32>
    %46 = vector.broadcast %3 : vector<1x128xf32> to vector<64x128xf32>
    %47 = arith.subf %34, %46 : vector<64x128xf32>
    %cst_32 = arith.constant dense<0.000000e+00> : vector<8x128xf32>
    %48 = tpu.matmul %45, %47, %cst_32 {dimension_numbers = #tpu.dot_dimension_numbers<[1], [0], [0], [1], [0, 0, 1, 1], [], []>} : vector<8x64xf32>, vector<64x128xf32>, vector<8x128xf32> -> vector<8x128xf32>
    %49 = arith.mulf %48, %48 : vector<8x128xf32>
    %cst_33 = arith.constant dense<0.000000e+00> : vector<8xf32>
    %50 = vector.multi_reduction <add>, %49, %cst_33 [1] : vector<8x128xf32> to vector<8xf32>
    %51 = vector.shape_cast %50 : vector<8xf32> to vector<8x1xf32>
    %cst_34 = arith.constant 1.000000e-24 : f32
    %52 = vector.broadcast %cst_34 : f32 to vector<8x1xf32>
    %53 = arith.maximumf %51, %52 : vector<8x1xf32>
    %54 = math.rsqrt %53 : vector<8x1xf32>
    %55 = vector.broadcast %54 : vector<8x1xf32> to vector<8x128xf32>
    %56 = arith.mulf %48, %55 : vector<8x128xf32>
    %57 = arith.truncf %56 : vector<8x128xf32> to vector<8x128xbf16>
    %cst_35 = arith.constant dense<0.000000e+00> : vector<8x128xf32>
    %58 = tpu.matmul %57, %0, %cst_35 {dimension_numbers = #tpu.dot_dimension_numbers<[1], [0], [0], [1], [0, 0, 1, 1], [], []>} : vector<8x128xbf16>, vector<128x128xbf16>, vector<8x128xf32> -> vector<8x128xf32>
    %59 = vector.broadcast %1 : vector<1x128xf32> to vector<8x128xf32>
    %60 = arith.addf %58, %59 : vector<8x128xf32>
    %c0_36 = arith.constant 0 : index
    %c80 = arith.constant 80 : index
    %c0_37 = arith.constant 0 : index
    %61 = vector.load %arg10[%c0_36, %c80, %c0_37] : memref<2x88x128xf32, #tpu.memory_space<vmem>>, vector<1x8x128xf32>
    %62 = vector.shape_cast %61 : vector<1x8x128xf32> to vector<8x128xf32>
    %63 = vector.shape_cast %60 : vector<8x128xf32> to vector<1x8x128xf32>
    tpu.vector_store %arg10[%c0_36, %c80, %c0_37], %63 {strides = array<i32>} : memref<2x88x128xf32, #tpu.memory_space<vmem>>, vector<1x8x128xf32>,
    %64 = vector.extract_strided_slice %32 {offsets = [1, 0, 0], sizes = [1, 64, 128], strides = [1, 1, 1]} : vector<2x64x128xf32> to vector<1x64x128xf32>
    %65 = vector.shape_cast %64 : vector<1x64x128xf32> to vector<64x128xf32>
    %cst_38 = arith.constant dense<0.000000e+00> : vector<8x64xf32>
    %66 = tpu.matmul %2, %65, %cst_38 {dimension_numbers = #tpu.dot_dimension_numbers<[1], [1], [0], [0], [0, 0, 1, 0], [], []>} : vector<8x128xf32>, vector<64x128xf32>, vector<8x64xf32> -> vector<8x64xf32>
    %cst_39 = arith.constant dense<0xFF800000> : vector<64xf32>
    %67 = vector.multi_reduction <maximumf>, %66, %cst_39 [0] : vector<8x64xf32> to vector<64xf32>
    %68 = vector.shape_cast %67 : vector<64xf32> to vector<1x64xf32>
    %69 = vector.broadcast %68 : vector<1x64xf32> to vector<8x64xf32>
    %70 = arith.subf %66, %69 : vector<8x64xf32>
    %71 = math.exp %70 : vector<8x64xf32>
    %cst_40 = arith.constant dense<0.000000e+00> : vector<64xf32>
    %72 = vector.multi_reduction <add>, %71, %cst_40 [0] : vector<8x64xf32> to vector<64xf32>
    %73 = vector.shape_cast %72 : vector<64xf32> to vector<1x64xf32>
    %74 = tpu.reciprocal %73 {approx = true} : vector<1x64xf32> -> vector<1x64xf32>
    %75 = vector.broadcast %74 : vector<1x64xf32> to vector<8x64xf32>
    %76 = arith.mulf %71, %75 : vector<8x64xf32>
    %77 = vector.broadcast %3 : vector<1x128xf32> to vector<64x128xf32>
    %78 = arith.subf %65, %77 : vector<64x128xf32>
    %cst_41 = arith.constant dense<0.000000e+00> : vector<8x128xf32>
    %79 = tpu.matmul %76, %78, %cst_41 {dimension_numbers = #tpu.dot_dimension_numbers<[1], [0], [0], [1], [0, 0, 1, 1], [], []>} : vector<8x64xf32>, vector<64x128xf32>, vector<8x128xf32> -> vector<8x128xf32>
    %80 = arith.mulf %79, %79 : vector<8x128xf32>
    %cst_42 = arith.constant dense<0.000000e+00> : vector<8xf32>
    %81 = vector.multi_reduction <add>, %80, %cst_42 [1] : vector<8x128xf32> to vector<8xf32>
    %82 = vector.shape_cast %81 : vector<8xf32> to vector<8x1xf32>
    %cst_43 = arith.constant 1.000000e-24 : f32
    %83 = vector.broadcast %cst_43 : f32 to vector<8x1xf32>
    %84 = arith.maximumf %82, %83 : vector<8x1xf32>
    %85 = math.rsqrt %84 : vector<8x1xf32>
    %86 = vector.broadcast %85 : vector<8x1xf32> to vector<8x128xf32>
    %87 = arith.mulf %79, %86 : vector<8x128xf32>
    %88 = arith.truncf %87 : vector<8x128xf32> to vector<8x128xbf16>
    %cst_44 = arith.constant dense<0.000000e+00> : vector<8x128xf32>
    %89 = tpu.matmul %88, %0, %cst_44 {dimension_numbers = #tpu.dot_dimension_numbers<[1], [0], [0], [1], [0, 0, 1, 1], [], []>} : vector<8x128xbf16>, vector<128x128xbf16>, vector<8x128xf32> -> vector<8x128xf32>
    %90 = vector.broadcast %1 : vector<1x128xf32> to vector<8x128xf32>
    %91 = arith.addf %89, %90 : vector<8x128xf32>
    %c1 = arith.constant 1 : index
    %c80_45 = arith.constant 80 : index
    %c0_46 = arith.constant 0 : index
    %92 = vector.load %arg10[%c1, %c80_45, %c0_46] : memref<2x88x128xf32, #tpu.memory_space<vmem>>, vector<1x8x128xf32>
    %93 = vector.shape_cast %92 : vector<1x8x128xf32> to vector<8x128xf32>
    %94 = vector.shape_cast %91 : vector<8x128xf32> to vector<1x8x128xf32>
    tpu.vector_store %arg10[%c1, %c80_45, %c0_46], %94 {strides = array<i32>} : memref<2x88x128xf32, #tpu.memory_space<vmem>>, vector<1x8x128xf32>,
    return
  }
}

</mosaic_0001>

<llo_original>
// kernel: tpu_custom_call.1
$region0: #{tpu_custom_call.1}
  #allocation0 [shape = 'u32[]', space=smem, size = 0x4, offset = 0x4, fixed_abs, tag = 'smem constant byte address 0x4 - core index']
  #allocation1 [shape = 'u32[144,128]{1,0:T(1,128)}', space=vmem, size = 0x12000, scoped, tag = 'internal scratch']
  %s0 = inlined_call_operand.hbm [shape: f32[2,64,128], index: 0, kind: input, shape index: {}]
  %s1 = inlined_call_operand.hbm [shape: f32[2,16,256], index: 1, kind: input, shape index: {}]
  %s2 = inlined_call_operand.hbm [shape: bf16[128,128], index: 2, kind: input, shape index: {}]
  %s3 = inlined_call_operand.vmem [shape: f32[1,128], index: 3, kind: input, shape index: {}]
  %s4 = inlined_call_operand.hbm [shape: bf16[256,128], index: 4, kind: input, shape index: {}]
  %s5 = inlined_call_operand.vmem [shape: f32[1,128], index: 5, kind: input, shape index: {}]
  %s6 = inlined_call_operand.vmem [shape: f32[8,128], index: 6, kind: input, shape index: {}]
  %s7 = inlined_call_operand.vmem [shape: f32[1,128], index: 7, kind: input, shape index: {}]
  %s8 = inlined_call_operand.hbm [shape: bf16[128,128], index: 8, kind: input, shape index: {}]
  %s9 = inlined_call_operand.vmem [shape: f32[1,128], index: 9, kind: input, shape index: {}]
  %s10 = inlined_call_operand.hbm [shape: f32[2,88,128], index: 10, kind: output, shape index: {}]
  %s11 = sld [smem:[#allocation0]]
  $region70: #{tpu_custom_call.1} parent=0
    _
  %s13 = ssub.s32 1, %s11
  %s14 = scalar_select 0, %s13, %s11
  $region1: #{tpu_custom_call.1} parent=0
    #allocation2 [shape = 'u8[65536]{0}', space=vmem, size = 0x10000, scoped, tag = 'input window, operand 0, single buffered']
    #allocation3 [shape = 's32[1]{0}', space=sflag, size = 0x4, scoped, tag = 'scoped memory for tpu_custom_call.1']
    #allocation4 [shape = 's32[1]{0}', space=sflag, size = 0x4, scoped, tag = 'scoped memory for tpu_custom_call.1']
    #allocation5 [shape = 'u8[32768]{0}', space=vmem, size = 0x8000, scoped, tag = 'input window, operand 1, single buffered']
    #allocation6 [shape = 's32[1]{0}', space=sflag, size = 0x4, scoped, tag = 'scoped memory for tpu_custom_call.1']
    #allocation7 [shape = 'u8[32768]{0}', space=vmem, size = 0x8000, scoped, tag = 'input window, operand 2, single buffered']
    #allocation8 [shape = 'u8[65536]{0}', space=vmem, size = 0x10000, scoped, tag = 'input window, operand 4, single buffered']
    #allocation9 [shape = 's32[1]{0}', space=sflag, size = 0x4, scoped, tag = 'scoped memory for tpu_custom_call.1']
    #allocation10 [shape = 'u8[32768]{0}', space=vmem, size = 0x8000, scoped, tag = 'input window, operand 8, single buffered']
    #allocation11 [shape = 'u8[90112]{0}', space=vmem, size = 0x16000, scoped, tag = 'output window, operand 0, single buffered']
    %15 = vsyncpa [#allocation3], 0
    %16 = vsyncpa [#allocation6], 0
    %17 = vsyncpa [#allocation9], 0
    %18 = vsyncpa [#allocation4], 0
    // Predicated region
    $region2: #{tpu_custom_call.1} parent=1 // pred_check
      _
    $region3: #{tpu_custom_call.1} parent=1 // pred_check_branch
      %20 = sbr.rel (0) target = $region5
    $region4: #{tpu_custom_call.1} parent=1 // pred_region
      %s22 = ssub.s32 2048, 2048
      %23 = vsyncadd [#allocation3], %s22
      %s24 = sshll.u32 [#allocation2], 4
      %s25 = int_to_ptr.vmem [resolvable:$true] %s24
      %30 = dma.hbm_to_vmem [thread:$0]  %s0, 2048, %s25, [#allocation3], 128, 128, 8
    $region5: #{tpu_custom_call.1} parent=1 // pred_fallthru
      _
    // Predicated region
    $region6: #{tpu_custom_call.1} parent=1 // pred_check
      _
    $region7: #{tpu_custom_call.1} parent=1 // pred_check_branch
      %32 = sbr.rel (0) target = $region9
    $region8: #{tpu_custom_call.1} parent=1 // pred_region
      %s34 = ssub.s32 1024, 1024
      %35 = vsyncadd [#allocation6], %s34
      %s36 = sshll.u32 [#allocation5], 4
      %s37 = int_to_ptr.vmem [resolvable:$true] %s36
      %42 = dma.hbm_to_vmem [thread:$0]  %s1, 1024, %s37, [#allocation6], 256, 256, 16
    $region9: #{tpu_custom_call.1} parent=1 // pred_fallthru
      _
    // Predicated region
    $region10: #{tpu_custom_call.1} parent=1 // pred_check
      _
    $region11: #{tpu_custom_call.1} parent=1 // pred_check_branch
      %44 = sbr.rel (0) target = $region13
    $region12: #{tpu_custom_call.1} parent=1 // pred_region
      %s46 = ssub.s32 1024, 1024
      %47 = vsyncadd [#allocation6], %s46
      %s48 = sshll.u32 [#allocation7], 4
      %s49 = int_to_ptr.vmem [resolvable:$true] %s48
      %54 = dma.hbm_to_vmem [thread:$0]  %s2, 1024, %s49, [#allocation6], 64, 64, 4
    $region13: #{tpu_custom_call.1} parent=1 // pred_fallthru
      _
    // Predicated region
    $region14: #{tpu_custom_call.1} parent=1 // pred_check
      _
    $region15: #{tpu_custom_call.1} parent=1 // pred_check_branch
      %56 = sbr.rel (0) target = $region17
    $region16: #{tpu_custom_call.1} parent=1 // pred_region
      _
    $region17: #{tpu_custom_call.1} parent=1 // pred_fallthru
      _
    // Predicated region
    $region18: #{tpu_custom_call.1} parent=1 // pred_check
      _
    $region19: #{tpu_custom_call.1} parent=1 // pred_check_branch
      %58 = sbr.rel (0) target = $region21
    $region20: #{tpu_custom_call.1} parent=1 // pred_region
      %s60 = ssub.s32 2048, 2048
      %61 = vsyncadd [#allocation9], %s60
      %s62 = sshll.u32 [#allocation8], 4
      %s63 = int_to_ptr.vmem [resolvable:$true] %s62
      %68 = dma.hbm_to_vmem [thread:$0]  %s4, 2048, %s63, [#allocation9], 64, 64, 4
    $region21: #{tpu_custom_call.1} parent=1 // pred_fallthru
      _
    // Predicated region
    $region22: #{tpu_custom_call.1} parent=1 // pred_check
      _
    $region23: #{tpu_custom_call.1} parent=1 // pred_check_branch
      %70 = sbr.rel (0) target = $region25
    $region24: #{tpu_custom_call.1} parent=1 // pred_region
      _
    $region25: #{tpu_custom_call.1} parent=1 // pred_fallthru
      _
    // Predicated region
    $region26: #{tpu_custom_call.1} parent=1 // pred_check
      _
    $region27: #{tpu_custom_call.1} parent=1 // pred_check_branch
      %72 = sbr.rel (0) target = $region29
    $region28: #{tpu_custom_call.1} parent=1 // pred_region
      _
    $region29: #{tpu_custom_call.1} parent=1 // pred_fallthru
      _
    // Predicated region
    $region30: #{tpu_custom_call.1} parent=1 // pred_check
      _
    $region31: #{tpu_custom_call.1} parent=1 // pred_check_branch
      %74 = sbr.rel (0) target = $region33
    $region32: #{tpu_custom_call.1} parent=1 // pred_region
      _
    $region33: #{tpu_custom_call.1} parent=1 // pred_fallthru
      _
    // Predicated region
    $region34: #{tpu_custom_call.1} parent=1 // pred_check
      _
    $region35: #{tpu_custom_call.1} parent=1 // pred_check_branch
      %76 = sbr.rel (0) target = $region37
    $region36: #{tpu_custom_call.1} parent=1 // pred_region
      %s78 = ssub.s32 1024, 1024
      %79 = vsyncadd [#allocation9], %s78
      %s80 = sshll.u32 [#allocation10], 4
      %s81 = int_to_ptr.vmem [resolvable:$true] %s80
      %86 = dma.hbm_to_vmem [thread:$0]  %s8, 1024, %s81, [#allocation9], 64, 64, 4
    $region37: #{tpu_custom_call.1} parent=1 // pred_fallthru
      _
    // Predicated region
    $region38: #{tpu_custom_call.1} parent=1 // pred_check
      _
    $region39: #{tpu_custom_call.1} parent=1 // pred_check_branch
      %88 = sbr.rel (0) target = $region41
    $region40: #{tpu_custom_call.1} parent=1 // pred_region
      _
    $region41: #{tpu_custom_call.1} parent=1 // pred_fallthru
      _
    // Predicated region
    $region42: #{tpu_custom_call.1} parent=1 // pred_check
      _
    $region43: #{tpu_custom_call.1} parent=1 // pred_check_branch
      %90 = sbr.rel (0) target = $region45
    $region44: #{tpu_custom_call.1} parent=1 // pred_region
      %91 = dma.done [#allocation3], 2048
    $region45: #{tpu_custom_call.1} parent=1 // pred_fallthru
      _
    // Predicated region
    $region46: #{tpu_custom_call.1} parent=1 // pred_check
      _
    $region47: #{tpu_custom_call.1} parent=1 // pred_check_branch
      %93 = sbr.rel (0) target = $region49
    $region48: #{tpu_custom_call.1} parent=1 // pred_region
      %94 = dma.done [#allocation6], 1024
    $region49: #{tpu_custom_call.1} parent=1 // pred_fallthru
      _
    // Predicated region
    $region50: #{tpu_custom_call.1} parent=1 // pred_check
      _
    $region51: #{tpu_custom_call.1} parent=1 // pred_check_branch
      %96 = sbr.rel (0) target = $region53
    $region52: #{tpu_custom_call.1} parent=1 // pred_region
      %97 = dma.done [#allocation6], 1024
    $region53: #{tpu_custom_call.1} parent=1 // pred_fallthru
      _
    // Predicated region
    $region54: #{tpu_custom_call.1} parent=1 // pred_check
      _
    $region55: #{tpu_custom_call.1} parent=1 // pred_check_branch
      %99 = sbr.rel (0) target = $region57
    $region56: #{tpu_custom_call.1} parent=1 // pred_region
      %100 = dma.done [#allocation9], 2048
    $region57: #{tpu_custom_call.1} parent=1 // pred_fallthru
      _
    // Predicated region
    $region58: #{tpu_custom_call.1} parent=1 // pred_check
      _
    $region59: #{tpu_custom_call.1} parent=1 // pred_check_branch
      %102 = sbr.rel (0) target = $region61
    $region60: #{tpu_custom_call.1} parent=1 // pred_region
      %103 = dma.done [#allocation9], 1024
    $region61: #{tpu_custom_call.1} parent=1 // pred_fallthru
      _
    %v105 = vld [vmem:[#allocation10] sm:$0xf]
    %v106 = vld [vmem:[#allocation10 + $0x4] sm:$0xf]
    %v107 = vld [vmem:[#allocation10 + $0x8] sm:$0xf]
    %v108 = vld [vmem:[#allocation10 + $0xc] sm:$0xf]
    %v109 = vld [vmem:[#allocation10 + $0x10] sm:$0xf]
    %v110 = vld [vmem:[#allocation10 + $0x14] sm:$0xf]
    %v111 = vld [vmem:[#allocation10 + $0x18] sm:$0xf]
    %v112 = vld [vmem:[#allocation10 + $0x1c] sm:$0xf]
    %v113 = vld [vmem:[#allocation10 + $0x20] sm:$0xf]
    %v114 = vld [vmem:[#allocation10 + $0x24] sm:$0xf]
    %v115 = vld [vmem:[#allocation10 + $0x28] sm:$0xf]
    %v116 = vld [vmem:[#allocation10 + $0x2c] sm:$0xf]
    %v117 = vld [vmem:[#allocation10 + $0x30] sm:$0xf]
    %v118 = vld [vmem:[#allocation10 + $0x34] sm:$0xf]
    %v119 = vld [vmem:[#allocation10 + $0x38] sm:$0xf]
    %v120 = vld [vmem:[#allocation10 + $0x3c] sm:$0xf]
    %v121 = vld [vmem:[%s9] sm:$0x1]
    %v122 = vld [vmem:[%s6] sm:$0xff]
    %v123 = vld [vmem:[%s7] sm:$0x1]
    %v124 = vld [vmem:[#allocation2] sm:$0xff]
    %v125 = vld [vmem:[#allocation2 + $0x8] sm:$0xff]
    %v126 = vld [vmem:[#allocation2 + $0x10] sm:$0xff]
    %v127 = vld [vmem:[#allocation2 + $0x18] sm:$0xff]
    %v128 = vld [vmem:[#allocation2 + $0x20] sm:$0xff]
    %v129 = vld [vmem:[#allocation2 + $0x28] sm:$0xff]
    %v130 = vld [vmem:[#allocation2 + $0x30] sm:$0xff]
    %v131 = vld [vmem:[#allocation2 + $0x38] sm:$0xff]
    %v132 = vld [vmem:[#allocation2 + $0x40] sm:$0xff]
    %v133 = vld [vmem:[#allocation2 + $0x48] sm:$0xff]
    %v134 = vld [vmem:[#allocation2 + $0x50] sm:$0xff]
    %v135 = vld [vmem:[#allocation2 + $0x58] sm:$0xff]
    %v136 = vld [vmem:[#allocation2 + $0x60] sm:$0xff]
    %v137 = vld [vmem:[#allocation2 + $0x68] sm:$0xff]
    %v138 = vld [vmem:[#allocation2 + $0x70] sm:$0xff]
    %v139 = vld [vmem:[#allocation2 + $0x78] sm:$0xff]
    %v140 = vpack.c.bf16 %v125, %v124
    %v141 = vpack.c.bf16 %v127, %v126
    %v142 = vpack.c.bf16 %v129, %v128
    %v143 = vpack.c.bf16 %v131, %v130
    %v144 = vpack.c.bf16 %v133, %v132
    %v145 = vpack.c.bf16 %v135, %v134
    %v146 = vpack.c.bf16 %v137, %v136
    %v147 = vpack.c.bf16 %v139, %v138
    %v148 = vld [vmem:[#allocation7] sm:$0xf]
    %v149 = vld [vmem:[#allocation7 + $0x4] sm:$0xf]
    %v150 = vld [vmem:[#allocation7 + $0x8] sm:$0xf]
    %v151 = vld [vmem:[#allocation7 + $0xc] sm:$0xf]
    %v152 = vld [vmem:[#allocation7 + $0x10] sm:$0xf]
    %v153 = vld [vmem:[#allocation7 + $0x14] sm:$0xf]
    %v154 = vld [vmem:[#allocation7 + $0x18] sm:$0xf]
    %v155 = vld [vmem:[#allocation7 + $0x1c] sm:$0xf]
    %v156 = vld [vmem:[#allocation7 + $0x20] sm:$0xf]
    %v157 = vld [vmem:[#allocation7 + $0x24] sm:$0xf]
    %v158 = vld [vmem:[#allocation7 + $0x28] sm:$0xf]
    %v159 = vld [vmem:[#allocation7 + $0x2c] sm:$0xf]
    %v160 = vld [vmem:[#allocation7 + $0x30] sm:$0xf]
    %v161 = vld [vmem:[#allocation7 + $0x34] sm:$0xf]
    %v162 = vld [vmem:[#allocation7 + $0x38] sm:$0xf]
    %v163 = vld [vmem:[#allocation7 + $0x3c] sm:$0xf]
    %v164 = vld [vmem:[%s3] sm:$0x1]
    %v166 = vlaneseq
    %v167 = vshrl.u32 %v166, 7
    %v168 = vsub.s32 0, %v167
    %v169 = vrot.slane %v164, %v168
    %v187 = vunpack.c.l.b16 %v148
    %v188 = vunpack.c.l.b16 %v149
    %v189 = vunpack.c.l.b16 %v150
    %v190 = vunpack.c.l.b16 %v151
    %v191 = vunpack.c.l.b16 %v152
    %v192 = vunpack.c.l.b16 %v153
    %v193 = vunpack.c.l.b16 %v154
    %v194 = vunpack.c.l.b16 %v155
    %v195 = vunpack.c.l.b16 %v156
    %v196 = vunpack.c.l.b16 %v157
    %v197 = vunpack.c.l.b16 %v158
    %v198 = vunpack.c.l.b16 %v159
    %v199 = vunpack.c.l.b16 %v160
    %v200 = vunpack.c.l.b16 %v161
    %v201 = vunpack.c.l.b16 %v162
    %v202 = vunpack.c.l.b16 %v163
    %v203 = vpack.c.b16 %v188, %v187
    %v204 = vpack.c.b16 %v190, %v189
    %v205 = vpack.c.b16 %v192, %v191
    %v206 = vpack.c.b16 %v194, %v193
    %v207 = vpack.c.b16 %v196, %v195
    %v208 = vpack.c.b16 %v198, %v197
    %v209 = vpack.c.b16 %v200, %v199
    %v210 = vpack.c.b16 %v202, %v201
    %219 = vmatprep.subr.bf16.mxu0 0
    %220 = vmatpush1.bf16.msra.mxu0 %v210
    %221 = vmatprep.subr.bf16.mxu0 0
    %222 = vmatpush1.bf16.msra.mxu0 %v209
    %223 = vmatprep.subr.bf16.mxu0 0
    %224 = vmatpush1.bf16.msra.mxu0 %v208
    %225 = vmatprep.subr.bf16.mxu0 0
    %226 = vmatpush1.bf16.msra.mxu0 %v207
    %227 = vmatprep.subr.bf16.mxu0 0
    %228 = vmatpush1.bf16.msra.mxu0 %v206
    %229 = vmatprep.subr.bf16.mxu0 0
    %230 = vmatpush1.bf16.msra.mxu0 %v205
    %231 = vmatprep.subr.bf16.mxu0 0
    %232 = vmatpush1.bf16.msra.mxu0 %v204
    %233 = vmatprep.subr.bf16.mxu0 0
    %234 = vmatpush1.bf16.msra.mxu0 %v203
    %235 = vmatprep.subr.bf16.mxu0 0
    %236 = vmatpush2.bf16.msra.mxu0 0
    %237 = vmatprep.subr.bf16.mxu0 0
    %238 = vmatpush2.bf16.msra.mxu0 0
    %239 = vmatprep.subr.bf16.mxu0 0
    %240 = vmatpush2.bf16.msra.mxu0 0
    %241 = vmatprep.subr.bf16.mxu0 0
    %242 = vmatpush2.bf16.msra.mxu0 0
    %243 = vmatprep.subr.bf16.mxu0 0
    %244 = vmatpush2.bf16.msra.mxu0 0
    %245 = vmatprep.subr.bf16.mxu0 0
    %246 = vmatpush2.bf16.msra.mxu0 0
    %247 = vmatprep.subr.bf16.mxu0 0
    %248 = vmatpush2.bf16.msra.mxu0 0
    %249 = vmatprep.subr.bf16.mxu0 0
    %250 = vmatpush2.bf16.msra.mxu0 0
    %251 = vmatprep.mubr.bf16.mxu0 0
    %252 = vmatmul.mubr.bf16.gmra.mxu0 %v140
    %v253 = vpop.f32.mrf.mxu0
    %v254 = vadd.f32 %v169, %v253
    %v255 = vpop.f32.mrf.mxu0
    %v256 = vpop.f32.mrf.mxu0
    %v257 = vadd.f32 %v169, %v256
    %v258 = vpop.f32.mrf.mxu0
    %259 = vmatprep.mubr.bf16.mxu0 0
    %260 = vmatmul.mubr.bf16.gmra.mxu0 %v141
    %v261 = vpop.f32.mrf.mxu0
    %v262 = vadd.f32 %v169, %v261
    %v263 = vpop.f32.mrf.mxu0
    %v264 = vpop.f32.mrf.mxu0
    %v265 = vadd.f32 %v169, %v264
    %v266 = vpop.f32.mrf.mxu0
    %267 = vmatprep.mubr.bf16.mxu0 0
    %268 = vmatmul.mubr.bf16.gmra.mxu0 %v142
    %v269 = vpop.f32.mrf.mxu0
    %v270 = vadd.f32 %v169, %v269
    %v271 = vpop.f32.mrf.mxu0
    %v272 = vpop.f32.mrf.mxu0
    %v273 = vadd.f32 %v169, %v272
    %v274 = vpop.f32.mrf.mxu0
    %275 = vmatprep.mubr.bf16.mxu0 0
    %276 = vmatmul.mubr.bf16.gmra.mxu0 %v143
    %v277 = vpop.f32.mrf.mxu0
    %v278 = vadd.f32 %v169, %v277
    %v279 = vpop.f32.mrf.mxu0
    %v280 = vpop.f32.mrf.mxu0
    %v281 = vadd.f32 %v169, %v280
    %v282 = vpop.f32.mrf.mxu0
    %283 = vmatprep.mubr.bf16.mxu0 0
    %284 = vmatmul.mubr.bf16.gmra.mxu0 %v144
    %v285 = vpop.f32.mrf.mxu0
    %v286 = vadd.f32 %v169, %v285
    %v287 = vpop.f32.mrf.mxu0
    %v288 = vpop.f32.mrf.mxu0
    %v289 = vadd.f32 %v169, %v288
    %v290 = vpop.f32.mrf.mxu0
    %291 = vmatprep.mubr.bf16.mxu0 0
    %292 = vmatmul.mubr.bf16.gmra.mxu0 %v145
    %v293 = vpop.f32.mrf.mxu0
    %v294 = vadd.f32 %v169, %v293
    %v295 = vpop.f32.mrf.mxu0
    %v296 = vpop.f32.mrf.mxu0
    %v297 = vadd.f32 %v169, %v296
    %v298 = vpop.f32.mrf.mxu0
    %299 = vmatprep.mubr.bf16.mxu0 0
    %300 = vmatmul.mubr.bf16.gmra.mxu0 %v146
    %v301 = vpop.f32.mrf.mxu0
    %v302 = vadd.f32 %v169, %v301
    %v303 = vpop.f32.mrf.mxu0
    %v304 = vpop.f32.mrf.mxu0
    %v305 = vadd.f32 %v169, %v304
    %v306 = vpop.f32.mrf.mxu0
    %307 = vmatprep.mubr.bf16.mxu0 0
    %308 = vmatmul.mubr.bf16.gmra.mxu0 %v147
    %v309 = vpop.f32.mrf.mxu0
    %v310 = vadd.f32 %v169, %v309
    %v311 = vpop.f32.mrf.mxu0
    %v312 = vpop.f32.mrf.mxu0
    %v313 = vadd.f32 %v169, %v312
    %v314 = vpop.f32.mrf.mxu0
    %315 = vdwg.mxu0
    %v316 = vld [vmem:[#allocation5] sm:$0xff]
    %v317 = vld [vmem:[#allocation5 + $0x8] sm:$0xff]
    %v318 = vld [vmem:[#allocation5 + $0x10] sm:$0xff]
    %v319 = vld [vmem:[#allocation5 + $0x18] sm:$0xff]
    %v320 = vld [vmem:[#allocation5 + $0x20] sm:$0xff]
    %v321 = vld [vmem:[#allocation5 + $0x28] sm:$0xff]
    %v322 = vld [vmem:[#allocation5 + $0x30] sm:$0xff]
    %v323 = vld [vmem:[#allocation5 + $0x38] sm:$0xff]
    %v324 = vpack.c.bf16 %v318, %v316
    %v325 = vpack.c.bf16 %v319, %v317
    %v326 = vpack.c.bf16 %v322, %v320
    %v327 = vpack.c.bf16 %v323, %v321
    %v328 = vld [vmem:[#allocation8] sm:$0xf]
    %v329 = vld [vmem:[#allocation8 + $0x4] sm:$0xf]
    %v330 = vld [vmem:[#allocation8 + $0x8] sm:$0xf]
    %v331 = vld [vmem:[#allocation8 + $0xc] sm:$0xf]
    %v332 = vld [vmem:[#allocation8 + $0x10] sm:$0xf]
    %v333 = vld [vmem:[#allocation8 + $0x14] sm:$0xf]
    %v334 = vld [vmem:[#allocation8 + $0x18] sm:$0xf]
    %v335 = vld [vmem:[#allocation8 + $0x1c] sm:$0xf]
    %v336 = vld [vmem:[#allocation8 + $0x20] sm:$0xf]
    %v337 = vld [vmem:[#allocation8 + $0x24] sm:$0xf]
    %v338 = vld [vmem:[#allocation8 + $0x28] sm:$0xf]
    %v339 = vld [vmem:[#allocation8 + $0x2c] sm:$0xf]
    %v340 = vld [vmem:[#allocation8 + $0x30] sm:$0xf]
    %v341 = vld [vmem:[#allocation8 + $0x34] sm:$0xf]
    %v342 = vld [vmem:[#allocation8 + $0x38] sm:$0xf]
    %v343 = vld [vmem:[#allocation8 + $0x3c] sm:$0xf]
    %v344 = vld [vmem:[#allocation8 + $0x40] sm:$0xf]
    %v345 = vld [vmem:[#allocation8 + $0x44] sm:$0xf]
    %v346 = vld [vmem:[#allocation8 + $0x48] sm:$0xf]
    %v347 = vld [vmem:[#allocation8 + $0x4c] sm:$0xf]
    %v348 = vld [vmem:[#allocation8 + $0x50] sm:$0xf]
    %v349 = vld [vmem:[#allocation8 + $0x54] sm:$0xf]
    %v350 = vld [vmem:[#allocation8 + $0x58] sm:$0xf]
    %v351 = vld [vmem:[#allocation8 + $0x5c] sm:$0xf]
    %v352 = vld [vmem:[#allocation8 + $0x60] sm:$0xf]
    %v353 = vld [vmem:[#allocation8 + $0x64] sm:$0xf]
    %v354 = vld [vmem:[#allocation8 + $0x68] sm:$0xf]
    %v355 = vld [vmem:[#allocation8 + $0x6c] sm:$0xf]
    %v356 = vld [vmem:[#allocation8 + $0x70] sm:$0xf]
    %v357 = vld [vmem:[#allocation8 + $0x74] sm:$0xf]
    %v358 = vld [vmem:[#allocation8 + $0x78] sm:$0xf]
    %v359 = vld [vmem:[#allocation8 + $0x7c] sm:$0xf]
    %v360 = vld [vmem:[%s5] sm:$0x1]
    %v362 = vlaneseq
    %v363 = vshrl.u32 %v362, 7
    %v364 = vsub.s32 0, %v363
    %v365 = vrot.slane %v360, %v364
    %v399 = vunpack.c.l.b16 %v328
    %v400 = vunpack.c.l.b16 %v329
    %v401 = vunpack.c.l.b16 %v330
    %v402 = vunpack.c.l.b16 %v331
    %v403 = vunpack.c.l.b16 %v332
    %v404 = vunpack.c.l.b16 %v333
    %v405 = vunpack.c.l.b16 %v334
    %v406 = vunpack.c.l.b16 %v335
    %v407 = vunpack.c.l.b16 %v336
    %v408 = vunpack.c.l.b16 %v337
    %v409 = vunpack.c.l.b16 %v338
    %v410 = vunpack.c.l.b16 %v339
    %v411 = vunpack.c.l.b16 %v340
    %v412 = vunpack.c.l.b16 %v341
    %v413 = vunpack.c.l.b16 %v342
    %v414 = vunpack.c.l.b16 %v343
    %v415 = vunpack.c.l.b16 %v344
    %v416 = vunpack.c.l.b16 %v345
    %v417 = vunpack.c.l.b16 %v346
    %v418 = vunpack.c.l.b16 %v347
    %v419 = vunpack.c.l.b16 %v348
    %v420 = vunpack.c.l.b16 %v349
    %v421 = vunpack.c.l.b16 %v350
    %v422 = vunpack.c.l.b16 %v351
    %v423 = vunpack.c.l.b16 %v352
    %v424 = vunpack.c.l.b16 %v353
    %v425 = vunpack.c.l.b16 %v354
    %v426 = vunpack.c.l.b16 %v355
    %v427 = vunpack.c.l.b16 %v356
    %v428 = vunpack.c.l.b16 %v357
    %v429 = vunpack.c.l.b16 %v358
    %v430 = vunpack.c.l.b16 %v359
    %v431 = vpack.c.b16 %v400, %v399
    %v432 = vpack.c.b16 %v402, %v401
    %v433 = vpack.c.b16 %v404, %v403
    %v434 = vpack.c.b16 %v406, %v405
    %v435 = vpack.c.b16 %v408, %v407
    %v436 = vpack.c.b16 %v410, %v409
    %v437 = vpack.c.b16 %v412, %v411
    %v438 = vpack.c.b16 %v414, %v413
    %v439 = vpack.c.b16 %v416, %v415
    %v440 = vpack.c.b16 %v418, %v417
    %v441 = vpack.c.b16 %v420, %v419
    %v442 = vpack.c.b16 %v422, %v421
    %v443 = vpack.c.b16 %v424, %v423
    %v444 = vpack.c.b16 %v426, %v425
    %v445 = vpack.c.b16 %v428, %v427
    %v446 = vpack.c.b16 %v430, %v429
    %463 = vmatprep.subr.bf16.mxu0 0
    %464 = vmatpush1.bf16.msra.mxu0 %v438
    %465 = vmatprep.subr.bf16.mxu0 0
    %466 = vmatpush1.bf16.msra.mxu0 %v437
    %467 = vmatprep.subr.bf16.mxu0 0
    %468 = vmatpush1.bf16.msra.mxu0 %v436
    %469 = vmatprep.subr.bf16.mxu0 0
    %470 = vmatpush1.bf16.msra.mxu0 %v435
    %471 = vmatprep.subr.bf16.mxu0 0
    %472 = vmatpush1.bf16.msra.mxu0 %v434
    %473 = vmatprep.subr.bf16.mxu0 0
    %474 = vmatpush1.bf16.msra.mxu0 %v433
    %475 = vmatprep.subr.bf16.mxu0 0
    %476 = vmatpush1.bf16.msra.mxu0 %v432
    %477 = vmatprep.subr.bf16.mxu0 0
    %478 = vmatpush1.bf16.msra.mxu0 %v431
    %479 = vmatprep.subr.bf16.mxu0 0
    %480 = vmatpush2.bf16.msra.mxu0 %v446
    %481 = vmatprep.subr.bf16.mxu0 0
    %482 = vmatpush2.bf16.msra.mxu0 %v445
    %483 = vmatprep.subr.bf16.mxu0 0
    %484 = vmatpush2.bf16.msra.mxu0 %v444
    %485 = vmatprep.subr.bf16.mxu0 0
    %486 = vmatpush2.bf16.msra.mxu0 %v443
    %487 = vmatprep.subr.bf16.mxu0 0
    %488 = vmatpush2.bf16.msra.mxu0 %v442
    %489 = vmatprep.subr.bf16.mxu0 0
    %490 = vmatpush2.bf16.msra.mxu0 %v441
    %491 = vmatprep.subr.bf16.mxu0 0
    %492 = vmatpush2.bf16.msra.mxu0 %v440
    %493 = vmatprep.subr.bf16.mxu0 0
    %494 = vmatpush2.bf16.msra.mxu0 %v439
    %495 = vmatprep.mubr.bf16.mxu0 %v325
    %496 = vmatmul.mubr.bf16.gmra.mxu0 %v324
    %v497 = vpop.f32.mrf.mxu0
    %v498 = vadd.f32 %v365, %v497
    %v499 = vpop.f32.mrf.mxu0
    %v500 = vpop.f32.mrf.mxu0
    %v501 = vadd.f32 %v365, %v500
    %v502 = vpop.f32.mrf.mxu0
    %503 = vmatprep.mubr.bf16.mxu0 %v327
    %504 = vmatmul.mubr.bf16.gmra.mxu0 %v326
    %v505 = vpop.f32.mrf.mxu0
    %v506 = vadd.f32 %v365, %v505
    %v507 = vpop.f32.mrf.mxu0
    %v508 = vpop.f32.mrf.mxu0
    %v509 = vadd.f32 %v365, %v508
    %v510 = vpop.f32.mrf.mxu0
    %511 = vdwg.mxu0
    %v512 = vpack.c.bf16 %v257, %v254
    %v513 = vpack.c.bf16 %v265, %v262
    %v514 = vpack.c.bf16 %v273, %v270
    %v515 = vpack.c.bf16 %v281, %v278
    %v516 = vpack.c.bf16 %v289, %v286
    %v517 = vpack.c.bf16 %v297, %v294
    %v518 = vpack.c.bf16 %v305, %v302
    %v519 = vpack.c.bf16 %v313, %v310
    %v521 = vlaneseq
    %v522 = vshrl.u32 %v521, 7
    %v523 = vsub.s32 0, %v522
    %v524 = vrot.slane %v121, %v523
    %v542 = vunpack.c.l.b16 %v105
    %v543 = vunpack.c.l.b16 %v106
    %v544 = vunpack.c.l.b16 %v107
    %v545 = vunpack.c.l.b16 %v108
    %v546 = vunpack.c.l.b16 %v109
    %v547 = vunpack.c.l.b16 %v110
    %v548 = vunpack.c.l.b16 %v111
    %v549 = vunpack.c.l.b16 %v112
    %v550 = vunpack.c.l.b16 %v113
    %v551 = vunpack.c.l.b16 %v114
    %v552 = vunpack.c.l.b16 %v115
    %v553 = vunpack.c.l.b16 %v116
    %v554 = vunpack.c.l.b16 %v117
    %v555 = vunpack.c.l.b16 %v118
    %v556 = vunpack.c.l.b16 %v119
    %v557 = vunpack.c.l.b16 %v120
    %v558 = vpack.c.b16 %v543, %v542
    %v559 = vpack.c.b16 %v545, %v544
    %v560 = vpack.c.b16 %v547, %v546
    %v561 = vpack.c.b16 %v549, %v548
    %v562 = vpack.c.b16 %v551, %v550
    %v563 = vpack.c.b16 %v553, %v552
    %v564 = vpack.c.b16 %v555, %v554
    %v565 = vpack.c.b16 %v557, %v556
    %574 = vmatprep.subr.bf16.mxu0 0
    %575 = vmatpush1.bf16.msra.mxu0 %v565
    %576 = vmatprep.subr.bf16.mxu0 0
    %577 = vmatpush1.bf16.msra.mxu0 %v564
    %578 = vmatprep.subr.bf16.mxu0 0
    %579 = vmatpush1.bf16.msra.mxu0 %v563
    %580 = vmatprep.subr.bf16.mxu0 0
    %581 = vmatpush1.bf16.msra.mxu0 %v562
    %582 = vmatprep.subr.bf16.mxu0 0
    %583 = vmatpush1.bf16.msra.mxu0 %v561
    %584 = vmatprep.subr.bf16.mxu0 0
    %585 = vmatpush1.bf16.msra.mxu0 %v560
    %586 = vmatprep.subr.bf16.mxu0 0
    %587 = vmatpush1.bf16.msra.mxu0 %v559
    %588 = vmatprep.subr.bf16.mxu0 0
    %589 = vmatpush1.bf16.msra.mxu0 %v558
    %590 = vmatprep.subr.bf16.mxu0 0
    %591 = vmatpush2.bf16.msra.mxu0 0
    %592 = vmatprep.subr.bf16.mxu0 0
    %593 = vmatpush2.bf16.msra.mxu0 0
    %594 = vmatprep.subr.bf16.mxu0 0
    %595 = vmatpush2.bf16.msra.mxu0 0
    %596 = vmatprep.subr.bf16.mxu0 0
    %597 = vmatpush2.bf16.msra.mxu0 0
    %598 = vmatprep.subr.bf16.mxu0 0
    %599 = vmatpush2.bf16.msra.mxu0 0
    %600 = vmatprep.subr.bf16.mxu0 0
    %601 = vmatpush2.bf16.msra.mxu0 0
    %602 = vmatprep.subr.bf16.mxu0 0
    %603 = vmatpush2.bf16.msra.mxu0 0
    %604 = vmatprep.subr.bf16.mxu0 0
    %605 = vmatpush2.bf16.msra.mxu0 0
    %606 = vmatprep.mubr.bf16.mxu0 0
    %607 = vmatmul.mubr.bf16.gmra.mxu0 %v512
    %v608 = vpop.f32.mrf.mxu0
    %v609 = vadd.f32 %v524, %v608
    %v610 = vpop.f32.mrf.mxu0
    %v611 = vpop.f32.mrf.mxu0
    %v612 = vadd.f32 %v524, %v611
    %v613 = vpop.f32.mrf.mxu0
    %614 = vmatprep.mubr.bf16.mxu0 0
    %615 = vmatmul.mubr.bf16.gmra.mxu0 %v513
    %v616 = vpop.f32.mrf.mxu0
    %v617 = vadd.f32 %v524, %v616
    %v618 = vpop.f32.mrf.mxu0
    %v619 = vpop.f32.mrf.mxu0
    %v620 = vadd.f32 %v524, %v619
    %v621 = vpop.f32.mrf.mxu0
    %622 = vmatprep.mubr.bf16.mxu0 0
    %623 = vmatmul.mubr.bf16.gmra.mxu0 %v514
    %v624 = vpop.f32.mrf.mxu0
    %v625 = vadd.f32 %v524, %v624
    %v626 = vpop.f32.mrf.mxu0
    %v627 = vpop.f32.mrf.mxu0
    %v628 = vadd.f32 %v524, %v627
    %v629 = vpop.f32.mrf.mxu0
    %630 = vmatprep.mubr.bf16.mxu0 0
    %631 = vmatmul.mubr.bf16.gmra.mxu0 %v515
    %v632 = vpop.f32.mrf.mxu0
    %v633 = vadd.f32 %v524, %v632
    %v634 = vpop.f32.mrf.mxu0
    %v635 = vpop.f32.mrf.mxu0
    %v636 = vadd.f32 %v524, %v635
    %v637 = vpop.f32.mrf.mxu0
    %638 = vmatprep.mubr.bf16.mxu0 0
    %639 = vmatmul.mubr.bf16.gmra.mxu0 %v516
    %v640 = vpop.f32.mrf.mxu0
    %v641 = vadd.f32 %v524, %v640
    %v642 = vpop.f32.mrf.mxu0
    %v643 = vpop.f32.mrf.mxu0
    %v644 = vadd.f32 %v524, %v643
    %v645 = vpop.f32.mrf.mxu0
    %646 = vmatprep.mubr.bf16.mxu0 0
    %647 = vmatmul.mubr.bf16.gmra.mxu0 %v517
    %v648 = vpop.f32.mrf.mxu0
    %v649 = vadd.f32 %v524, %v648
    %v650 = vpop.f32.mrf.mxu0
    %v651 = vpop.f32.mrf.mxu0
    %v652 = vadd.f32 %v524, %v651
    %v653 = vpop.f32.mrf.mxu0
    %654 = vmatprep.mubr.bf16.mxu0 0
    %655 = vmatmul.mubr.bf16.gmra.mxu0 %v518
    %v656 = vpop.f32.mrf.mxu0
    %v657 = vadd.f32 %v524, %v656
    %v658 = vpop.f32.mrf.mxu0
    %v659 = vpop.f32.mrf.mxu0
    %v660 = vadd.f32 %v524, %v659
    %v661 = vpop.f32.mrf.mxu0
    %662 = vmatprep.mubr.bf16.mxu0 0
    %663 = vmatmul.mubr.bf16.gmra.mxu0 %v519
    %v664 = vpop.f32.mrf.mxu0
    %v665 = vadd.f32 %v524, %v664
    %v666 = vpop.f32.mrf.mxu0
    %v667 = vpop.f32.mrf.mxu0
    %v668 = vadd.f32 %v524, %v667
    %v669 = vpop.f32.mrf.mxu0
    %670 = vdwg.mxu0
    %671 = vst [vmem:[#allocation11] sm:$0xff] %v609
    %672 = vst [vmem:[#allocation11 + $0x8] sm:$0xff] %v612
    %673 = vst [vmem:[#allocation11 + $0x10] sm:$0xff] %v617
    %674 = vst [vmem:[#allocation11 + $0x18] sm:$0xff] %v620
    %675 = vst [vmem:[#allocation11 + $0x20] sm:$0xff] %v625
    %676 = vst [vmem:[#allocation11 + $0x28] sm:$0xff] %v628
    %677 = vst [vmem:[#allocation11 + $0x30] sm:$0xff] %v633
    %678 = vst [vmem:[#allocation11 + $0x38] sm:$0xff] %v636
    %679 = vst [vmem:[#allocation11 + $0x58] sm:$0xff] %v641
    %680 = vst [vmem:[#allocation11 + $0x60] sm:$0xff] %v644
    %681 = vst [vmem:[#allocation11 + $0x68] sm:$0xff] %v649
    %682 = vst [vmem:[#allocation11 + $0x70] sm:$0xff] %v652
    %683 = vst [vmem:[#allocation11 + $0x78] sm:$0xff] %v657
    %684 = vst [vmem:[#allocation11 + $0x80] sm:$0xff] %v660
    %685 = vst [vmem:[#allocation11 + $0x88] sm:$0xff] %v665
    %686 = vst [vmem:[#allocation11 + $0x90] sm:$0xff] %v668
    %v687 = vpack.c.bf16 %v501, %v498
    %v688 = vpack.c.bf16 %v509, %v506
    %689 = vmatprep.subr.bf16.mxu0 0
    %690 = vmatpush1.bf16.msra.mxu0 %v565
    %691 = vmatprep.subr.bf16.mxu0 0
    %692 = vmatpush1.bf16.msra.mxu0 %v564
    %693 = vmatprep.subr.bf16.mxu0 0
    %694 = vmatpush1.bf16.msra.mxu0 %v563
    %695 = vmatprep.subr.bf16.mxu0 0
    %696 = vmatpush1.bf16.msra.mxu0 %v562
    %697 = vmatprep.subr.bf16.mxu0 0
    %698 = vmatpush1.bf16.msra.mxu0 %v561
    %699 = vmatprep.subr.bf16.mxu0 0
    %700 = vmatpush1.bf16.msra.mxu0 %v560
    %701 = vmatprep.subr.bf16.mxu0 0
    %702 = vmatpush1.bf16.msra.mxu0 %v559
    %703 = vmatprep.subr.bf16.mxu0 0
    %704 = vmatpush1.bf16.msra.mxu0 %v558
    %705 = vmatprep.subr.bf16.mxu0 0
    %706 = vmatpush2.bf16.msra.mxu0 0
    %707 = vmatprep.subr.bf16.mxu0 0
    %708 = vmatpush2.bf16.msra.mxu0 0
    %709 = vmatprep.subr.bf16.mxu0 0
    %710 = vmatpush2.bf16.msra.mxu0 0
    %711 = vmatprep.subr.bf16.mxu0 0
    %712 = vmatpush2.bf16.msra.mxu0 0
    %713 = vmatprep.subr.bf16.mxu0 0
    %714 = vmatpush2.bf16.msra.mxu0 0
    %715 = vmatprep.subr.bf16.mxu0 0
    %716 = vmatpush2.bf16.msra.mxu0 0
    %717 = vmatprep.subr.bf16.mxu0 0
    %718 = vmatpush2.bf16.msra.mxu0 0
    %719 = vmatprep.subr.bf16.mxu0 0
    %720 = vmatpush2.bf16.msra.mxu0 0
    %721 = vmatprep.mubr.bf16.mxu0 0
    %722 = vmatmul.mubr.bf16.gmra.mxu0 %v687
    %v723 = vpop.f32.mrf.mxu0
    %v724 = vadd.f32 %v524, %v723
    %v725 = vpop.f32.mrf.mxu0
    %v726 = vpop.f32.mrf.mxu0
    %v727 = vadd.f32 %v524, %v726
    %v728 = vpop.f32.mrf.mxu0
    %729 = vmatprep.mubr.bf16.mxu0 0
    %730 = vmatmul.mubr.bf16.gmra.mxu0 %v688
    %v731 = vpop.f32.mrf.mxu0
    %v732 = vadd.f32 %v524, %v731
    %v733 = vpop.f32.mrf.mxu0
    %v734 = vpop.f32.mrf.mxu0
    %v735 = vadd.f32 %v524, %v734
    %v736 = vpop.f32.mrf.mxu0
    %737 = vdwg.mxu0
    %738 = vst [vmem:[#allocation11 + $0x40] sm:$0xff] %v724
    %739 = vst [vmem:[#allocation11 + $0x48] sm:$0xff] %v727
    %740 = vst [vmem:[#allocation11 + $0x98] sm:$0xff] %v732
    %741 = vst [vmem:[#allocation11 + $0xa0] sm:$0xff] %v735
    %742 = vmatprep.subr.mxu0 0.0
    %743 = vmatpush1.xpose.msra.mxu0 0.0
    %744 = vmatprep.subr.mxu0 0.0
    %745 = vmatpush1.xpose.msra.mxu0 0.0
    %746 = vmatprep.subr.mxu0 0.0
    %747 = vmatpush1.xpose.msra.mxu0 0.0
    %748 = vmatprep.subr.mxu0 0.0
    %749 = vmatpush1.xpose.msra.mxu0 0.0
    %750 = vmatprep.subr.mxu0 0.0
    %751 = vmatpush1.xpose.msra.mxu0 0.0
    %752 = vmatprep.subr.mxu0 0.0
    %753 = vmatpush1.xpose.msra.mxu0 0.0
    %754 = vmatprep.subr.mxu0 0.0
    %755 = vmatpush1.xpose.msra.mxu0 0.0
    %756 = vmatprep.subr.mxu0 0.0
    %757 = vmatpush1.xpose.msra.mxu0 0.0
    %758 = vmatprep.subr.mxu0 0.0
    %759 = vmatpush1.xpose.msra.mxu0 %v281
    %760 = vmatprep.subr.mxu0 0.0
    %761 = vmatpush1.xpose.msra.mxu0 %v278
    %762 = vmatprep.subr.mxu0 0.0
    %763 = vmatpush1.xpose.msra.mxu0 %v273
    %764 = vmatprep.subr.mxu0 0.0
    %765 = vmatpush1.xpose.msra.mxu0 %v270
    %766 = vmatprep.subr.mxu0 0.0
    %767 = vmatpush1.xpose.msra.mxu0 %v265
    %768 = vmatprep.subr.mxu0 0.0
    %769 = vmatpush1.xpose.msra.mxu0 %v262
    %770 = vmatprep.subr.mxu0 0.0
    %771 = vmatpush1.xpose.msra.mxu0 %v257
    %772 = vmatprep.subr.mxu0 0.0
    %773 = vmatpush1.xpose.msra.mxu0 %v254
    %774 = vmatprep.subr.mxu0 0.0
    %775 = vmatpush2.xpose.msra.mxu0 0.0
    %776 = vmatprep.subr.mxu0 0.0
    %777 = vmatpush2.xpose.msra.mxu0 0.0
    %778 = vmatprep.subr.mxu0 0.0
    %779 = vmatpush2.xpose.msra.mxu0 0.0
    %780 = vmatprep.subr.mxu0 0.0
    %781 = vmatpush2.xpose.msra.mxu0 0.0
    %782 = vmatprep.subr.mxu0 0.0
    %783 = vmatpush2.xpose.msra.mxu0 0.0
    %784 = vmatprep.subr.mxu0 0.0
    %785 = vmatpush2.xpose.msra.mxu0 0.0
    %786 = vmatprep.subr.mxu0 0.0
    %787 = vmatpush2.xpose.msra.mxu0 0.0
    %788 = vmatprep.subr.mxu0 0.0
    %789 = vmatpush2.xpose.msra.mxu0 0.0
    %790 = vmatprep.subr.mxu0 0.0
    %791 = vmatpush2.xpose.msra.mxu0 0.0
    %792 = vmatprep.subr.mxu0 0.0
    %793 = vmatpush2.xpose.msra.mxu0 0.0
    %794 = vmatprep.subr.mxu0 0.0
    %795 = vmatpush2.xpose.msra.mxu0 0.0
    %796 = vmatprep.subr.mxu0 0.0
    %797 = vmatpush2.xpose.msra.mxu0 0.0
    %798 = vmatprep.subr.mxu0 0.0
    %799 = vmatpush2.xpose.msra.mxu0 0.0
    %800 = vmatprep.subr.mxu0 0.0
    %801 = vmatpush2.xpose.msra.mxu0 0.0
    %802 = vmatprep.subr.mxu0 0.0
    %803 = vmatpush2.xpose.msra.mxu0 0.0
    %804 = vmatprep.subr.mxu0 0.0
    %805 = vmatpush2.xpose.msra.mxu0 0.0
    %806 = vmatprep.mubr.f32.mxu0 0.0
    %807 = vmatmul.mubr.f32.gmra.mxu0 %v122
    %v808 = vpop.f32.mrf.mxu0
    %v809 = vadd.f32 0.0, %v808
    %v810 = vpop.f32.mrf.mxu0
    %811 = vdwg.mxu0
    %vm812 = vcmask 523264
    %v813 = vsel %vm812, %v809, -inf
    %v814 = vrot.slane %v813, 4
    %v815 = vmax.f32 %v813, %v814
    %v816 = vrot.slane %v815, 2
    %v817 = vmax.f32 %v815, %v816
    %v818 = vrot.slane %v817, 1
    %v819 = vmax.f32 %v817, %v818
    %v820 = vsub.f32 %v809, %v819
    %v821 = vmul.f32 %v820, 1.442695
    %v822 = vpow.pop %v821
    %v823 = vsel %vm812, %v822, 0.0
    %v824 = vrot.slane %v823, 4
    %v825 = vadd.f32 %v823, %v824
    %v826 = vrot.slane %v825, 2
    %v827 = vadd.f32 %v825, %v826
    %v828 = vrot.slane %v827, 1
    %v829 = vadd.f32 %v827, %v828
    %v830 = vrcp.pop %v829
    %v831 = vmul.f32 %v822, %v830
    %v833 = vlaneseq
    %v834 = vshrl.u32 %v833, 7
    %v835 = vsub.s32 0, %v834
    %v836 = vrot.slane %v123, %v835
    %v838 = vsub.f32 %v254, %v836
    %v839 = vsub.f32 %v257, %v836
    %v840 = vsub.f32 %v262, %v836
    %v841 = vsub.f32 %v265, %v836
    %v842 = vsub.f32 %v270, %v836
    %v843 = vsub.f32 %v273, %v836
    %v844 = vsub.f32 %v278, %v836
    %v845 = vsub.f32 %v281, %v836
    %v847 = vsel %vm812, %v831, 0
    %849 = vmatprep.subr.mxu0 0.0
    %850 = vmatpush1.msra.mxu0 0.0
    %851 = vmatprep.subr.mxu0 0.0
    %852 = vmatpush1.msra.mxu0 0.0
    %853 = vmatprep.subr.mxu0 0.0
    %854 = vmatpush1.msra.mxu0 0.0
    %855 = vmatprep.subr.mxu0 0.0
    %856 = vmatpush1.msra.mxu0 0.0
    %857 = vmatprep.subr.mxu0 0.0
    %858 = vmatpush1.msra.mxu0 0.0
    %859 = vmatprep.subr.mxu0 0.0
    %860 = vmatpush1.msra.mxu0 0.0
    %861 = vmatprep.subr.mxu0 0.0
    %862 = vmatpush1.msra.mxu0 0.0
    %863 = vmatprep.subr.mxu0 0.0
    %864 = vmatpush1.msra.mxu0 0.0
    %865 = vmatprep.subr.mxu0 0.0
    %866 = vmatpush1.msra.mxu0 %v845
    %867 = vmatprep.subr.mxu0 0.0
    %868 = vmatpush1.msra.mxu0 %v844
    %869 = vmatprep.subr.mxu0 0.0
    %870 = vmatpush1.msra.mxu0 %v843
    %871 = vmatprep.subr.mxu0 0.0
    %872 = vmatpush1.msra.mxu0 %v842
    %873 = vmatprep.subr.mxu0 0.0
    %874 = vmatpush1.msra.mxu0 %v841
    %875 = vmatprep.subr.mxu0 0.0
    %876 = vmatpush1.msra.mxu0 %v840
    %877 = vmatprep.subr.mxu0 0.0
    %878 = vmatpush1.msra.mxu0 %v839
    %879 = vmatprep.subr.mxu0 0.0
    %880 = vmatpush1.msra.mxu0 %v838
    %881 = vmatprep.subr.mxu0 0.0
    %882 = vmatpush2.msra.mxu0 0.0
    %883 = vmatprep.subr.mxu0 0.0
    %884 = vmatpush2.msra.mxu0 0.0
    %885 = vmatprep.subr.mxu0 0.0
    %886 = vmatpush2.msra.mxu0 0.0
    %887 = vmatprep.subr.mxu0 0.0
    %888 = vmatpush2.msra.mxu0 0.0
    %889 = vmatprep.subr.mxu0 0.0
    %890 = vmatpush2.msra.mxu0 0.0
    %891 = vmatprep.subr.mxu0 0.0
    %892 = vmatpush2.msra.mxu0 0.0
    %893 = vmatprep.subr.mxu0 0.0
    %894 = vmatpush2.msra.mxu0 0.0
    %895 = vmatprep.subr.mxu0 0.0
    %896 = vmatpush2.msra.mxu0 0.0
    %897 = vmatprep.subr.mxu0 0.0
    %898 = vmatpush2.msra.mxu0 0.0
    %899 = vmatprep.subr.mxu0 0.0
    %900 = vmatpush2.msra.mxu0 0.0
    %901 = vmatprep.subr.mxu0 0.0
    %902 = vmatpush2.msra.mxu0 0.0
    %903 = vmatprep.subr.mxu0 0.0
    %904 = vmatpush2.msra.mxu0 0.0
    %905 = vmatprep.subr.mxu0 0.0
    %906 = vmatpush2.msra.mxu0 0.0
    %907 = vmatprep.subr.mxu0 0.0
    %908 = vmatpush2.msra.mxu0 0.0
    %909 = vmatprep.subr.mxu0 0.0
    %910 = vmatpush2.msra.mxu0 0.0
    %911 = vmatprep.subr.mxu0 0.0
    %912 = vmatpush2.msra.mxu0 0.0
    %913 = vmatprep.mubr.f32.mxu0 0.0
    %914 = vmatmul.mubr.f32.gmra.mxu0 %v847
    %v915 = vpop.f32.mrf.mxu0
    %v916 = vadd.f32 0.0, %v915
    %v917 = vpop.f32.mrf.mxu0
    %918 = vdwg.mxu0
    %v919 = vmul.f32 %v916, %v916
    %920 = vadd.xlane.f32.xlu0 %v919
    %v921 = vpop.xlane.xlu0 %920
    %v922 = vmax.f32 %v921, 1e-24
    %v923 = vrsqrt.pop %v922
    %v924 = vmul.f32 %v916, %v923
    %v925 = vpack.c.bf16 %v924, %v924
    %926 = vmatprep.subr.bf16.mxu0 0
    %927 = vmatpush1.bf16.msra.mxu0 %v565
    %928 = vmatprep.subr.bf16.mxu0 0
    %929 = vmatpush1.bf16.msra.mxu0 %v564
    %930 = vmatprep.subr.bf16.mxu0 0
    %931 = vmatpush1.bf16.msra.mxu0 %v563
    %932 = vmatprep.subr.bf16.mxu0 0
    %933 = vmatpush1.bf16.msra.mxu0 %v562
    %934 = vmatprep.subr.bf16.mxu0 0
    %935 = vmatpush1.bf16.msra.mxu0 %v561
    %936 = vmatprep.subr.bf16.mxu0 0
    %937 = vmatpush1.bf16.msra.mxu0 %v560
    %938 = vmatprep.subr.bf16.mxu0 0
    %939 = vmatpush1.bf16.msra.mxu0 %v559
    %940 = vmatprep.subr.bf16.mxu0 0
    %941 = vmatpush1.bf16.msra.mxu0 %v558
    %942 = vmatprep.subr.bf16.mxu0 0
    %943 = vmatpush2.bf16.msra.mxu0 0
    %944 = vmatprep.subr.bf16.mxu0 0
    %945 = vmatpush2.bf16.msra.mxu0 0
    %946 = vmatprep.subr.bf16.mxu0 0
    %947 = vmatpush2.bf16.msra.mxu0 0
    %948 = vmatprep.subr.bf16.mxu0 0
    %949 = vmatpush2.bf16.msra.mxu0 0
    %950 = vmatprep.subr.bf16.mxu0 0
    %951 = vmatpush2.bf16.msra.mxu0 0
    %952 = vmatprep.subr.bf16.mxu0 0
    %953 = vmatpush2.bf16.msra.mxu0 0
    %954 = vmatprep.subr.bf16.mxu0 0
    %955 = vmatpush2.bf16.msra.mxu0 0
    %956 = vmatprep.subr.bf16.mxu0 0
    %957 = vmatpush2.bf16.msra.mxu0 0
    %958 = vmatprep.mubr.bf16.mxu0 0
    %959 = vmatmul.mubr.bf16.gmra.mxu0 %v925
    %v960 = vpop.f32.mrf.mxu0
    %v961 = vadd.f32 %v524, %v960
    %v962 = vpop.f32.mrf.mxu0
    %v963 = vpop.f32.mrf.mxu0
    %v964 = vpop.f32.mrf.mxu0
    %965 = vdwg.mxu0
    %966 = vst [vmem:[#allocation11 + $0x50] sm:$0xff] %v961
    %967 = vmatprep.subr.mxu0 0.0
    %968 = vmatpush1.xpose.msra.mxu0 0.0
    %969 = vmatprep.subr.mxu0 0.0
    %970 = vmatpush1.xpose.msra.mxu0 0.0
    %971 = vmatprep.subr.mxu0 0.0
    %972 = vmatpush1.xpose.msra.mxu0 0.0
    %973 = vmatprep.subr.mxu0 0.0
    %974 = vmatpush1.xpose.msra.mxu0 0.0
    %975 = vmatprep.subr.mxu0 0.0
    %976 = vmatpush1.xpose.msra.mxu0 0.0
    %977 = vmatprep.subr.mxu0 0.0
    %978 = vmatpush1.xpose.msra.mxu0 0.0
    %979 = vmatprep.subr.mxu0 0.0
    %980 = vmatpush1.xpose.msra.mxu0 0.0
    %981 = vmatprep.subr.mxu0 0.0
    %982 = vmatpush1.xpose.msra.mxu0 0.0
    %983 = vmatprep.subr.mxu0 0.0
    %984 = vmatpush1.xpose.msra.mxu0 %v313
    %985 = vmatprep.subr.mxu0 0.0
    %986 = vmatpush1.xpose.msra.mxu0 %v310
    %987 = vmatprep.subr.mxu0 0.0
    %988 = vmatpush1.xpose.msra.mxu0 %v305
    %989 = vmatprep.subr.mxu0 0.0
    %990 = vmatpush1.xpose.msra.mxu0 %v302
    %991 = vmatprep.subr.mxu0 0.0
    %992 = vmatpush1.xpose.msra.mxu0 %v297
    %993 = vmatprep.subr.mxu0 0.0
    %994 = vmatpush1.xpose.msra.mxu0 %v294
    %995 = vmatprep.subr.mxu0 0.0
    %996 = vmatpush1.xpose.msra.mxu0 %v289
    %997 = vmatprep.subr.mxu0 0.0
    %998 = vmatpush1.xpose.msra.mxu0 %v286
    %999 = vmatprep.subr.mxu0 0.0
    %1000 = vmatpush2.xpose.msra.mxu0 0.0
    %1001 = vmatprep.subr.mxu0 0.0
    %1002 = vmatpush2.xpose.msra.mxu0 0.0
    %1003 = vmatprep.subr.mxu0 0.0
    %1004 = vmatpush2.xpose.msra.mxu0 0.0
    %1005 = vmatprep.subr.mxu0 0.0
    %1006 = vmatpush2.xpose.msra.mxu0 0.0
    %1007 = vmatprep.subr.mxu0 0.0
    %1008 = vmatpush2.xpose.msra.mxu0 0.0
    %1009 = vmatprep.subr.mxu0 0.0
    %1010 = vmatpush2.xpose.msra.mxu0 0.0
    %1011 = vmatprep.subr.mxu0 0.0
    %1012 = vmatpush2.xpose.msra.mxu0 0.0
    %1013 = vmatprep.subr.mxu0 0.0
    %1014 = vmatpush2.xpose.msra.mxu0 0.0
    %1015 = vmatprep.subr.mxu0 0.0
    %1016 = vmatpush2.xpose.msra.mxu0 0.0
    %1017 = vmatprep.subr.mxu0 0.0
    %1018 = vmatpush2.xpose.msra.mxu0 0.0
    %1019 = vmatprep.subr.mxu0 0.0
    %1020 = vmatpush2.xpose.msra.mxu0 0.0
    %1021 = vmatprep.subr.mxu0 0.0
    %1022 = vmatpush2.xpose.msra.mxu0 0.0
    %1023 = vmatprep.subr.mxu0 0.0
    %1024 = vmatpush2.xpose.msra.mxu0 0.0
    %1025 = vmatprep.subr.mxu0 0.0
    %1026 = vmatpush2.xpose.msra.mxu0 0.0
    %1027 = vmatprep.subr.mxu0 0.0
    %1028 = vmatpush2.xpose.msra.mxu0 0.0
    %1029 = vmatprep.subr.mxu0 0.0
    %1030 = vmatpush2.xpose.msra.mxu0 0.0
    %1031 = vmatprep.mubr.f32.mxu0 0.0
    %1032 = vmatmul.mubr.f32.gmra.mxu0 %v122
    %v1033 = vpop.f32.mrf.mxu0
    %v1034 = vadd.f32 0.0, %v1033
    %v1035 = vpop.f32.mrf.mxu0
    %1036 = vdwg.mxu0
    %v1037 = vsel %vm812, %v1034, -inf
    %v1038 = vrot.slane %v1037, 4
    %v1039 = vmax.f32 %v1037, %v1038
    %v1040 = vrot.slane %v1039, 2
    %v1041 = vmax.f32 %v1039, %v1040
    %v1042 = vrot.slane %v1041, 1
    %v1043 = vmax.f32 %v1041, %v1042
    %v1044 = vsub.f32 %v1034, %v1043
    %v1045 = vmul.f32 %v1044, 1.442695
    %v1046 = vpow.pop %v1045
    %v1047 = vsel %vm812, %v1046, 0.0
    %v1048 = vrot.slane %v1047, 4
    %v1049 = vadd.f32 %v1047, %v1048
    %v1050 = vrot.slane %v1049, 2
    %v1051 = vadd.f32 %v1049, %v1050
    %v1052 = vrot.slane %v1051, 1
    %v1053 = vadd.f32 %v1051, %v1052
    %v1054 = vrcp.pop %v1053
    %v1055 = vmul.f32 %v1046, %v1054
    %v1056 = vsub.f32 %v286, %v836
    %v1057 = vsub.f32 %v289, %v836
    %v1058 = vsub.f32 %v294, %v836
    %v1059 = vsub.f32 %v297, %v836
    %v1060 = vsub.f32 %v302, %v836
    %v1061 = vsub.f32 %v305, %v836
    %v1062 = vsub.f32 %v310, %v836
    %v1063 = vsub.f32 %v313, %v836
    %v1065 = vsel %vm812, %v1055, 0
    %1067 = vmatprep.subr.mxu0 0.0
    %1068 = vmatpush1.msra.mxu0 0.0
    %1069 = vmatprep.subr.mxu0 0.0
    %1070 = vmatpush1.msra.mxu0 0.0
    %1071 = vmatprep.subr.mxu0 0.0
    %1072 = vmatpush1.msra.mxu0 0.0
    %1073 = vmatprep.subr.mxu0 0.0
    %1074 = vmatpush1.msra.mxu0 0.0
    %1075 = vmatprep.subr.mxu0 0.0
    %1076 = vmatpush1.msra.mxu0 0.0
    %1077 = vmatprep.subr.mxu0 0.0
    %1078 = vmatpush1.msra.mxu0 0.0
    %1079 = vmatprep.subr.mxu0 0.0
    %1080 = vmatpush1.msra.mxu0 0.0
    %1081 = vmatprep.subr.mxu0 0.0
    %1082 = vmatpush1.msra.mxu0 0.0
    %1083 = vmatprep.subr.mxu0 0.0
    %1084 = vmatpush1.msra.mxu0 %v1063
    %1085 = vmatprep.subr.mxu0 0.0
    %1086 = vmatpush1.msra.mxu0 %v1062
    %1087 = vmatprep.subr.mxu0 0.0
    %1088 = vmatpush1.msra.mxu0 %v1061
    %1089 = vmatprep.subr.mxu0 0.0
    %1090 = vmatpush1.msra.mxu0 %v1060
    %1091 = vmatprep.subr.mxu0 0.0
    %1092 = vmatpush1.msra.mxu0 %v1059
    %1093 = vmatprep.subr.mxu0 0.0
    %1094 = vmatpush1.msra.mxu0 %v1058
    %1095 = vmatprep.subr.mxu0 0.0
    %1096 = vmatpush1.msra.mxu0 %v1057
    %1097 = vmatprep.subr.mxu0 0.0
    %1098 = vmatpush1.msra.mxu0 %v1056
    %1099 = vmatprep.subr.mxu0 0.0
    %1100 = vmatpush2.msra.mxu0 0.0
    %1101 = vmatprep.subr.mxu0 0.0
    %1102 = vmatpush2.msra.mxu0 0.0
    %1103 = vmatprep.subr.mxu0 0.0
    %1104 = vmatpush2.msra.mxu0 0.0
    %1105 = vmatprep.subr.mxu0 0.0
    %1106 = vmatpush2.msra.mxu0 0.0
    %1107 = vmatprep.subr.mxu0 0.0
    %1108 = vmatpush2.msra.mxu0 0.0
    %1109 = vmatprep.subr.mxu0 0.0
    %1110 = vmatpush2.msra.mxu0 0.0
    %1111 = vmatprep.subr.mxu0 0.0
    %1112 = vmatpush2.msra.mxu0 0.0
    %1113 = vmatprep.subr.mxu0 0.0
    %1114 = vmatpush2.msra.mxu0 0.0
    %1115 = vmatprep.subr.mxu0 0.0
    %1116 = vmatpush2.msra.mxu0 0.0
    %1117 = vmatprep.subr.mxu0 0.0
    %1118 = vmatpush2.msra.mxu0 0.0
    %1119 = vmatprep.subr.mxu0 0.0
    %1120 = vmatpush2.msra.mxu0 0.0
    %1121 = vmatprep.subr.mxu0 0.0
    %1122 = vmatpush2.msra.mxu0 0.0
    %1123 = vmatprep.subr.mxu0 0.0
    %1124 = vmatpush2.msra.mxu0 0.0
    %1125 = vmatprep.subr.mxu0 0.0
    %1126 = vmatpush2.msra.mxu0 0.0
    %1127 = vmatprep.subr.mxu0 0.0
    %1128 = vmatpush2.msra.mxu0 0.0
    %1129 = vmatprep.subr.mxu0 0.0
    %1130 = vmatpush2.msra.mxu0 0.0
    %1131 = vmatprep.mubr.f32.mxu0 0.0
    %1132 = vmatmul.mubr.f32.gmra.mxu0 %v1065
    %v1133 = vpop.f32.mrf.mxu0
    %v1134 = vadd.f32 0.0, %v1133
    %v1135 = vpop.f32.mrf.mxu0
    %1136 = vdwg.mxu0
    %v1137 = vmul.f32 %v1134, %v1134
    %1138 = vadd.xlane.f32.xlu0 %v1137
    %v1139 = vpop.xlane.xlu0 %1138
    %v1140 = vmax.f32 %v1139, 1e-24
    %v1141 = vrsqrt.pop %v1140
    %v1142 = vmul.f32 %v1134, %v1141
    %v1143 = vpack.c.bf16 %v1142, %v1142
    %1144 = vmatprep.subr.bf16.mxu0 0
    %1145 = vmatpush1.bf16.msra.mxu0 %v565
    %1146 = vmatprep.subr.bf16.mxu0 0
    %1147 = vmatpush1.bf16.msra.mxu0 %v564
    %1148 = vmatprep.subr.bf16.mxu0 0
    %1149 = vmatpush1.bf16.msra.mxu0 %v563
    %1150 = vmatprep.subr.bf16.mxu0 0
    %1151 = vmatpush1.bf16.msra.mxu0 %v562
    %1152 = vmatprep.subr.bf16.mxu0 0
    %1153 = vmatpush1.bf16.msra.mxu0 %v561
    %1154 = vmatprep.subr.bf16.mxu0 0
    %1155 = vmatpush1.bf16.msra.mxu0 %v560
    %1156 = vmatprep.subr.bf16.mxu0 0
    %1157 = vmatpush1.bf16.msra.mxu0 %v559
    %1158 = vmatprep.subr.bf16.mxu0 0
    %1159 = vmatpush1.bf16.msra.mxu0 %v558
    %1160 = vmatprep.subr.bf16.mxu0 0
    %1161 = vmatpush2.bf16.msra.mxu0 0
    %1162 = vmatprep.subr.bf16.mxu0 0
    %1163 = vmatpush2.bf16.msra.mxu0 0
    %1164 = vmatprep.subr.bf16.mxu0 0
    %1165 = vmatpush2.bf16.msra.mxu0 0
    %1166 = vmatprep.subr.bf16.mxu0 0
    %1167 = vmatpush2.bf16.msra.mxu0 0
    %1168 = vmatprep.subr.bf16.mxu0 0
    %1169 = vmatpush2.bf16.msra.mxu0 0
    %1170 = vmatprep.subr.bf16.mxu0 0
    %1171 = vmatpush2.bf16.msra.mxu0 0
    %1172 = vmatprep.subr.bf16.mxu0 0
    %1173 = vmatpush2.bf16.msra.mxu0 0
    %1174 = vmatprep.subr.bf16.mxu0 0
    %1175 = vmatpush2.bf16.msra.mxu0 0
    %1176 = vmatprep.mubr.bf16.mxu0 0
    %1177 = vmatmul.mubr.bf16.gmra.mxu0 %v1143
    %v1178 = vpop.f32.mrf.mxu0
    %v1179 = vadd.f32 %v524, %v1178
    %v1180 = vpop.f32.mrf.mxu0
    %v1181 = vpop.f32.mrf.mxu0
    %v1182 = vpop.f32.mrf.mxu0
    %1183 = vdwg.mxu0
    %s1184 = scalar_lea.vmem [#allocation11], 88
    %1185 = vst [vmem:[%s1184 + $0x50] sm:$0xff] %v1179
    // Predicated region
    $region62: #{tpu_custom_call.1} parent=1 // pred_check
      _
    $region63: #{tpu_custom_call.1} parent=1 // pred_check_branch
      %1187 = sbr.rel (0) target = $region65
    $region64: #{tpu_custom_call.1} parent=1 // pred_region
      %s1189 = ssub.s32 2816, 2816
      %1190 = vsyncadd [#allocation4], %s1189
      %s1191 = sshll.u32 [#allocation11], 4
      %s1192 = int_to_ptr.vmem [resolvable:$true] %s1191
      %1197 = dma.vmem_to_hbm [thread:$0]  %s1192, 2816, %s10, [#allocation4], 128, 128, 8
    $region65: #{tpu_custom_call.1} parent=1 // pred_fallthru
      _
    // Predicated region
    $region66: #{tpu_custom_call.1} parent=1 // pred_check
      _
    $region67: #{tpu_custom_call.1} parent=1 // pred_check_branch
      %1199 = sbr.rel (0) target = $region69
    $region68: #{tpu_custom_call.1} parent=1 // pred_region
      %1200 = dma.done [#allocation4], 2816
    $region69: #{tpu_custom_call.1} parent=1 // pred_fallthru
      _
    %1201 = vsyncpa [#allocation3], 1
    %1202 = vsyncpa [#allocation6], 1
    %1203 = vsyncpa [#allocation9], 1
    %1204 = vsyncpa [#allocation4], 1

</llo_original>
